<compile_context>
chip_gen: v6e
topology: v6e:2x2x1
jax: 0.10.0
libtpu: 0.0.40
codegen_flags: <defaults>
</compile_context>

<pallas_src>
import functools

import numpy as np
import jax
import jax.numpy as jnp
from jax.experimental import pallas as pl
from jax.experimental.pallas import tpu as pltpu


def _build_dft_operators(p):
    """Forward rFFT3 operator E (K,N) and inverse irFFT3 operator G (N,K), complex."""
    d_r = p // 2 + 1
    n = np.arange(p)
    # orthonormal 1-D DFT matrix: F1[k, n] = exp(-2pi*i k n / p) / sqrt(p)
    F1 = np.exp(-2j * np.pi * np.outer(n, n) / p) / np.sqrt(p)
    Fd = F1[:d_r, :]                                   # rfft along the last spatial dim
    E = np.kron(F1, np.kron(F1, Fd))                   # (p*p*d_r, p**3)

    # inverse full complex iFFT (ortho) along h and w
    Ginv1 = F1.conj().T                                # (p, p), [n, k]
    # inverse real FFT along d: Hermitian extension baked into weights c_k
    c = np.full(d_r, 2.0)
    c[0] = 1.0
    if p % 2 == 0:
        c[-1] = 1.0
    Gd = np.exp(2j * np.pi * np.outer(n, np.arange(d_r)) / p) / np.sqrt(p) * c[None, :]
    G = np.kron(Ginv1, np.kron(Ginv1, Gd))             # (p**3, p*p*d_r)
    return E, G


@functools.lru_cache(maxsize=None)
def _dft_operators_device(p):
    """Stacked, K-padded device operators (built once per p).

    EF = [Er; Ei]  (2*Kp, N) : forward rFFT3,  EF @ x -> [Xr; Xi]
    GF = [Gr, -Gi] (N, 2*Kp) : inverse irFFT3, GF @ [Yr; Yi] -> Re(irfft)
    bf16 twiddles are exact only for power-of-two p; keep f32 otherwise.
    """
    E, G = _build_dft_operators(p)
    K, N = E.shape
    Kp = ((K + 63) // 64) * 64                          # 2*Kp multiple of 128 (lane-dense)

    Er = np.zeros((Kp, N), np.float32); Er[:K] = E.real
    Ei = np.zeros((Kp, N), np.float32); Ei[:K] = E.imag
    EF = np.concatenate([Er, Ei], axis=0)               # (2*Kp, N)

    Gr = np.zeros((N, Kp), np.float32); Gr[:, :K] = G.real
    Gi = np.zeros((N, Kp), np.float32); Gi[:, :K] = G.imag
    GF = np.concatenate([Gr, -Gi], axis=1)              # (N, 2*Kp)

    op_dtype = jnp.bfloat16 if (p & (p - 1)) == 0 else jnp.float32
    return jnp.asarray(EF, op_dtype), jnp.asarray(GF, op_dtype)


def _choose_block_b(B, N, C):
    """Batch elements fused per grid step.

    Single-TC chips (v5e/v6e) want as few grid steps as possible — the ~600-cycle
    per-step overhead dwarfs the MXU work at these sizes — so fuse the whole batch
    when it fits. Cap by VMEM (bf16 x block + f32 out block, double-buffered) and
    keep the unrolled in-kernel loop short. Pick a divisor of B so no batch
    padding / garbage rows are ever computed.
    """
    per_elem = N * C * (2 + 4) * 2
    bb = max(1, min(B, 8, (8 << 20) // per_elem))
    while B % bb:
        bb -= 1
    return bb


def _global_filter_kernel(x_ref, ef_ref, gf_ref, wa_ref, wb_ref, o_ref, *, kp, block_b):
    # Grid-invariant operands (constant index_map -> DMA'd once, never refetched).
    ef = ef_ref[...]            # (2*Kp, N)  stacked forward DFT  [Er; Ei]
    gf = gf_ref[...]            # (N, 2*Kp)  stacked inverse DFT  [Gr, -Gi]
    wa = wa_ref[...]            # (2*Kp, C)  [Wr; Wr]   (f32)
    wb = wb_ref[...]            # (2*Kp, C)  [-Wi; Wi]  (f32)
    # Unrolled per-batch-element loop: two MXU dots + one VPU/XLU complex multiply
    # each, amortizing the grid-step overhead across block_b elements.
    for b in range(block_b):
        xb = x_ref[b].astype(ef.dtype)                                  # (N, C)
        # forward rFFT3: xf = [Xr; Xi]
        xf = jnp.dot(ef, xb, preferred_element_type=jnp.float32)        # (2*Kp, C) f32
        # complex spectral multiply without slices/concat: the sublane roll by Kp
        # swaps the [Xr; Xi] halves on the (otherwise idle) XLU.
        y = xf * wa + pltpu.roll(xf, kp, axis=0) * wb
        # inverse irFFT3 (real part): Gr @ Yr - Gi @ Yi as one stacked dot.
        o_ref[b] = jnp.dot(gf, y.astype(gf.dtype),
                           preferred_element_type=jnp.float32).astype(o_ref.dtype)


@functools.partial(jax.jit, static_argnames=("p", "block_b"))
def _global_filter_apply(x, complex_weight, ef, gf, *, p, block_b):
    B, N, C = x.shape
    K = p * p * (p // 2 + 1)
    Kp = ef.shape[0] // 2

    # Stream x to the kernel in bf16: halves the only per-step HBM->VMEM DMA.
    # (In the full GFNet block this cast fuses with the upstream layernorm.)
    xb = x.astype(jnp.bfloat16)

    # Spectral filter -> stacked roll-multiply operands (2*Kp, C), uploaded ONCE
    # (no per-batch-block tiling) and broadcast across the in-kernel batch loop.
    w = complex_weight.astype(jnp.float32).reshape(K, C, 2)
    pad = ((0, Kp - K), (0, 0))
    wr = jnp.pad(w[..., 0], pad)
    wi = jnp.pad(w[..., 1], pad)
    wa = jnp.concatenate([wr, wr], axis=0)              # (2*Kp, C)
    wb = jnp.concatenate([-wi, wi], axis=0)             # (2*Kp, C)

    kernel = functools.partial(_global_filter_kernel, kp=Kp, block_b=block_b)

    grid_spec = pltpu.PrefetchScalarGridSpec(
        num_scalar_prefetch=0,
        grid=(B // block_b,),
        in_specs=[
            # x in natural (B, N, C) layout: fully contiguous, lane-dense DMA,
            # no wrapper transposes / extra HBM passes.
            pl.BlockSpec((block_b, N, C), lambda b: (b, 0, 0)),
            # Grid-invariant operands; ~0.2 MB total, default double-buffering is
            # harmless at this size (pl.Buffered(1) deliberately not applied).
            pl.BlockSpec((2 * Kp, N), lambda b: (0, 0)),
            pl.BlockSpec((N, 2 * Kp), lambda b: (0, 0)),
            pl.BlockSpec((2 * Kp, C), lambda b: (0, 0)),
            pl.BlockSpec((2 * Kp, C), lambda b: (0, 0)),
        ],
        out_specs=pl.BlockSpec((block_b, N, C), lambda b: (b, 0, 0)),
    )

    return pl.pallas_call(
        kernel,
        out_shape=jax.ShapeDtypeStruct((B, N, C), jnp.float32),
        grid_spec=grid_spec,
        compiler_params=pltpu.CompilerParams(dimension_semantics=("parallel",)),
    )(xb, ef, gf, wa, wb)


def global_filter_forward(x, complex_weight, p):
    """Pallas implementation of Global_Filter.forward.

    x:              (B, N, C) with N == p**3, C == dim
    complex_weight: (p, p, p//2+1, C, 2) float32 (real/imag stacked, as in torch)
    """
    B, N, C = x.shape
    assert N == p * p * p, "Global_Filter requires N == p**3 (cubic token grid)"
    ef, gf = _dft_operators_device(p)
    block_b = _choose_block_b(B, N, C)
    return _global_filter_apply(x, complex_weight, ef, gf, p=p, block_b=block_b)


if __name__ == "__main__":
    # Small shapes consistent with the module: patch p=4 -> N=64 tokens, dim=128.
    # (Global_Filter only broadcasts correctly when h == w == d == p.)
    B, p, dim = 2, 4, 128
    N = p * p * p
    d_r = p // 2 + 1

    key = jax.random.PRNGKey(0)
    kx, kw = jax.random.split(key)
    x = jax.random.normal(kx, (B, N, dim), dtype=jnp.float32)
    # nn.Parameter(torch.randn(h, w, d//2+1, dim, 2) * 1.5), deterministic here
    complex_weight = 1.5 * jax.random.normal(kw, (p, p, d_r, dim, 2), dtype=jnp.float32)

    out = global_filter_forward(x, complex_weight, p)
    out = jax.block_until_ready(out)

    # Reference (host, numpy) of the exact torch semantics:
    x_np = np.asarray(x, dtype=np.float32).reshape(B, p, p, p, dim)
    w_np = np.asarray(complex_weight[..., 0]) + 1j * np.asarray(complex_weight[..., 1])
    xf = np.fft.rfftn(x_np, axes=(1, 2, 3), norm="ortho")
    ref = np.fft.irfftn(xf * w_np, s=(p, p, p), axes=(1, 2, 3), norm="ortho")
    ref = ref.reshape(B, N, dim).astype(np.float32)

    # bf16 inputs / single-pass bf16 MXU (f32 accumulate) -> max abs error ~2e-2
    # at these magnitudes; 5e-2 gives comfortable margin. Re-validate for larger p
    # (error grows with contraction length).
    np.testing.assert_allclose(np.asarray(out), ref, rtol=5e-2, atol=5e-2)
    print("KERNEL_OK")
</pallas_src>

<mosaic_0001>
module attributes {stable_mosaic.version = 11 : i64} {
  func.func @_global_filter_kernel(%arg0: i32, %arg1: memref<2x64x128xbf16, #tpu.memory_space<vmem>>, %arg2: memref<128x64xbf16, #tpu.memory_space<vmem>>, %arg3: memref<64x128xbf16, #tpu.memory_space<vmem>>, %arg4: memref<128x128xf32, #tpu.memory_space<vmem>>, %arg5: memref<128x128xf32, #tpu.memory_space<vmem>>, %arg6: memref<2x64x128xf32, #tpu.memory_space<vmem>>) attributes {dimension_semantics = [#tpu.dimension_semantics<parallel>], iteration_bounds = array<i64: 1>, scalar_prefetch = 0 : i64, scratch_operands = 0 : i64, tpu.core_type = #tpu.core_type<tc>, window_params = [{transform_indices = @transform_0, window_bounds = array<i64: 2, 64, 128>}, {pipeline_mode = #tpu.pipeline_mode<synchronous>, transform_indices = @transform_1, window_bounds = array<i64: 128, 64>}, {pipeline_mode = #tpu.pipeline_mode<synchronous>, transform_indices = @transform_2, window_bounds = array<i64: 64, 128>}, {pipeline_mode = #tpu.pipeline_mode<synchronous>, transform_indices = @transform_3, window_bounds = array<i64: 128, 128>}, {pipeline_mode = #tpu.pipeline_mode<synchronous>, transform_indices = @transform_4, window_bounds = array<i64: 128, 128>}, {transform_indices = @transform_5, window_bounds = array<i64: 2, 64, 128>}]} {
    %c0 = arith.constant 0 : index
    %c0_0 = arith.constant 0 : index
    %0 = vector.load %arg2[%c0, %c0_0] : memref<128x64xbf16, #tpu.memory_space<vmem>>, vector<128x64xbf16>
    %c0_1 = arith.constant 0 : index
    %c0_2 = arith.constant 0 : index
    %1 = vector.load %arg3[%c0_1, %c0_2] : memref<64x128xbf16, #tpu.memory_space<vmem>>, vector<64x128xbf16>
    %c0_3 = arith.constant 0 : index
    %c0_4 = arith.constant 0 : index
    %2 = vector.load %arg4[%c0_3, %c0_4] : memref<128x128xf32, #tpu.memory_space<vmem>>, vector<128x128xf32>
    %c0_5 = arith.constant 0 : index
    %c0_6 = arith.constant 0 : index
    %3 = vector.load %arg5[%c0_5, %c0_6] : memref<128x128xf32, #tpu.memory_space<vmem>>, vector<128x128xf32>
    %c0_7 = arith.constant 0 : index
    %c0_8 = arith.constant 0 : index
    %c0_9 = arith.constant 0 : index
    %4 = vector.load %arg1[%c0_7, %c0_8, %c0_9] : memref<2x64x128xbf16, #tpu.memory_space<vmem>>, vector<1x64x128xbf16>
    %5 = vector.shape_cast %4 : vector<1x64x128xbf16> to vector<64x128xbf16>
    %cst = arith.constant dense<0.000000e+00> : vector<128x128xf32>
    %6 = tpu.matmul %0, %5, %cst {dimension_numbers = #tpu.dot_dimension_numbers<[1], [0], [0], [1], [0, 0, 1, 1], [], []>} : vector<128x64xbf16>, vector<64x128xbf16>, vector<128x128xf32> -> vector<128x128xf32>
    %7 = arith.mulf %6, %2 : vector<128x128xf32>
    %c64_i32 = arith.constant 64 : i32
    %8 = tpu.dynamic_rotate %6 by %c64_i32 dim 0 : vector<128x128xf32>, i32 -> vector<128x128xf32>
    %9 = arith.mulf %8, %3 : vector<128x128xf32>
    %10 = arith.addf %7, %9 : vector<128x128xf32>
    %11 = arith.truncf %10 : vector<128x128xf32> to vector<128x128xbf16>
    %cst_10 = arith.constant dense<0.000000e+00> : vector<64x128xf32>
    %12 = tpu.matmul %1, %11, %cst_10 {dimension_numbers = #tpu.dot_dimension_numbers<[1], [0], [0], [1], [0, 0, 1, 1], [], []>} : vector<64x128xbf16>, vector<128x128xbf16>, vector<64x128xf32> -> vector<64x128xf32>
    %c0_11 = arith.constant 0 : index
    %c0_12 = arith.constant 0 : index
    %c0_13 = arith.constant 0 : index
    %13 = vector.load %arg6[%c0_11, %c0_12, %c0_13] : memref<2x64x128xf32, #tpu.memory_space<vmem>>, vector<1x64x128xf32>
    %14 = vector.shape_cast %13 : vector<1x64x128xf32> to vector<64x128xf32>
    %15 = vector.shape_cast %12 : vector<64x128xf32> to vector<1x64x128xf32>
    tpu.vector_store %arg6[%c0_11, %c0_12, %c0_13], %15 {strides = array<i32>} : memref<2x64x128xf32, #tpu.memory_space<vmem>>, vector<1x64x128xf32>,
    %c1 = arith.constant 1 : index
    %c0_14 = arith.constant 0 : index
    %c0_15 = arith.constant 0 : index
    %16 = vector.load %arg1[%c1, %c0_14, %c0_15] : memref<2x64x128xbf16, #tpu.memory_space<vmem>>, vector<1x64x128xbf16>
    %17 = vector.shape_cast %16 : vector<1x64x128xbf16> to vector<64x128xbf16>
    %cst_16 = arith.constant dense<0.000000e+00> : vector<128x128xf32>
    %18 = tpu.matmul %0, %17, %cst_16 {dimension_numbers = #tpu.dot_dimension_numbers<[1], [0], [0], [1], [0, 0, 1, 1], [], []>} : vector<128x64xbf16>, vector<64x128xbf16>, vector<128x128xf32> -> vector<128x128xf32>
    %19 = arith.mulf %18, %2 : vector<128x128xf32>
    %c64_i32_17 = arith.constant 64 : i32
    %20 = tpu.dynamic_rotate %18 by %c64_i32_17 dim 0 : vector<128x128xf32>, i32 -> vector<128x128xf32>
    %21 = arith.mulf %20, %3 : vector<128x128xf32>
    %22 = arith.addf %19, %21 : vector<128x128xf32>
    %23 = arith.truncf %22 : vector<128x128xf32> to vector<128x128xbf16>
    %cst_18 = arith.constant dense<0.000000e+00> : vector<64x128xf32>
    %24 = tpu.matmul %1, %23, %cst_18 {dimension_numbers = #tpu.dot_dimension_numbers<[1], [0], [0], [1], [0, 0, 1, 1], [], []>} : vector<64x128xbf16>, vector<128x128xbf16>, vector<64x128xf32> -> vector<64x128xf32>
    %c1_19 = arith.constant 1 : index
    %c0_20 = arith.constant 0 : index
    %c0_21 = arith.constant 0 : index
    %25 = vector.load %arg6[%c1_19, %c0_20, %c0_21] : memref<2x64x128xf32, #tpu.memory_space<vmem>>, vector<1x64x128xf32>
    %26 = vector.shape_cast %25 : vector<1x64x128xf32> to vector<64x128xf32>
    %27 = vector.shape_cast %24 : vector<64x128xf32> to vector<1x64x128xf32>
    tpu.vector_store %arg6[%c1_19, %c0_20, %c0_21], %27 {strides = array<i32>} : memref<2x64x128xf32, #tpu.memory_space<vmem>>, vector<1x64x128xf32>,
    return
  }
  func.func @transform_0(%arg0: i32) -> (i32, i32, i32) {
    %c0_i32 = arith.constant 0 : i32
    %c0_i32_0 = arith.constant 0 : i32
    %c0_i32_1 = arith.constant 0 : i32
    return %arg0, %c0_i32, %c0_i32_0 : i32, i32, i32
  }
  func.func @transform_1(%arg0: i32) -> (i32, i32) {
    %c0_i32 = arith.constant 0 : i32
    %c0_i32_0 = arith.constant 0 : i32
    %c0_i32_1 = arith.constant 0 : i32
    return %c0_i32, %c0_i32_0 : i32, i32
  }
  func.func @transform_2(%arg0: i32) -> (i32, i32) {
    %c0_i32 = arith.constant 0 : i32
    %c0_i32_0 = arith.constant 0 : i32
    %c0_i32_1 = arith.constant 0 : i32
    return %c0_i32, %c0_i32_0 : i32, i32
  }
  func.func @transform_3(%arg0: i32) -> (i32, i32) {
    %c0_i32 = arith.constant 0 : i32
    %c0_i32_0 = arith.constant 0 : i32
    %c0_i32_1 = arith.constant 0 : i32
    return %c0_i32, %c0_i32_0 : i32, i32
  }
  func.func @transform_4(%arg0: i32) -> (i32, i32) {
    %c0_i32 = arith.constant 0 : i32
    %c0_i32_0 = arith.constant 0 : i32
    %c0_i32_1 = arith.constant 0 : i32
    return %c0_i32, %c0_i32_0 : i32, i32
  }
  func.func @transform_5(%arg0: i32) -> (i32, i32, i32) {
    %c0_i32 = arith.constant 0 : i32
    %c0_i32_0 = arith.constant 0 : i32
    %c0_i32_1 = arith.constant 0 : i32
    return %arg0, %c0_i32, %c0_i32_0 : i32, i32, i32
  }
}

</mosaic_0001>

<llo_original>
// kernel: _global_filter_apply.1
$region0: #{_global_filter_apply.1}
  #allocation0 [shape = 'u32[]', space=smem, size = 0x4, offset = 0x4, fixed_abs, tag = 'smem constant byte address 0x4 - core index']
  #allocation1 [shape = 'u32[144,128]{1,0:T(1,128)}', space=vmem, size = 0x12000, scoped, tag = 'internal scratch']
  %s0 = inlined_call_operand.vmem [shape: bf16[2,64,128], index: 0, kind: input, shape index: {}]
  %s1 = inlined_call_operand.vmem [shape: bf16[128,64], index: 1, kind: input, shape index: {}]
  %s2 = inlined_call_operand.vmem [shape: bf16[64,128], index: 2, kind: input, shape index: {}]
  %s3 = inlined_call_operand.vmem [shape: f32[128,128], index: 3, kind: input, shape index: {}]
  %s4 = inlined_call_operand.vmem [shape: f32[128,128], index: 4, kind: input, shape index: {}]
  %s5 = inlined_call_operand.hbm [shape: f32[2,64,128], index: 5, kind: output, shape index: {}]
  %s6 = sld [smem:[#allocation0]]
  $region30: #{_global_filter_apply.1} parent=0
    _
  %s8 = ssub.s32 1, %s6
  %s9 = scalar_select 0, %s8, %s6
  $region1: #{_global_filter_apply.1} parent=0
    #allocation2 [shape = 'u8[65536]{0}', space=vmem, size = 0x10000, scoped, tag = 'output window, operand 0, single buffered']
    #allocation3 [shape = 's32[1]{0}', space=sflag, size = 0x4, scoped, tag = 'scoped memory for _global_filter_apply.1']
    %10 = vsyncpa [#allocation3], 0
    // Predicated region
    $region2: #{_global_filter_apply.1} parent=1 // pred_check
      _
    $region3: #{_global_filter_apply.1} parent=1 // pred_check_branch
      %12 = sbr.rel (0) target = $region5
    $region4: #{_global_filter_apply.1} parent=1 // pred_region
      _
    $region5: #{_global_filter_apply.1} parent=1 // pred_fallthru
      _
    // Predicated region
    $region6: #{_global_filter_apply.1} parent=1 // pred_check
      _
    $region7: #{_global_filter_apply.1} parent=1 // pred_check_branch
      %14 = sbr.rel (0) target = $region9
    $region8: #{_global_filter_apply.1} parent=1 // pred_region
      _
    $region9: #{_global_filter_apply.1} parent=1 // pred_fallthru
      _
    // Predicated region
    $region10: #{_global_filter_apply.1} parent=1 // pred_check
      _
    $region11: #{_global_filter_apply.1} parent=1 // pred_check_branch
      %16 = sbr.rel (0) target = $region13
    $region12: #{_global_filter_apply.1} parent=1 // pred_region
      _
    $region13: #{_global_filter_apply.1} parent=1 // pred_fallthru
      _
    // Predicated region
    $region14: #{_global_filter_apply.1} parent=1 // pred_check
      _
    $region15: #{_global_filter_apply.1} parent=1 // pred_check_branch
      %18 = sbr.rel (0) target = $region17
    $region16: #{_global_filter_apply.1} parent=1 // pred_region
      _
    $region17: #{_global_filter_apply.1} parent=1 // pred_fallthru
      _
    // Predicated region
    $region18: #{_global_filter_apply.1} parent=1 // pred_check
      _
    $region19: #{_global_filter_apply.1} parent=1 // pred_check_branch
      %20 = sbr.rel (0) target = $region21
    $region20: #{_global_filter_apply.1} parent=1 // pred_region
      _
    $region21: #{_global_filter_apply.1} parent=1 // pred_fallthru
      _
    %v22 = vld [vmem:[%s1] sm:$0xf]
    %v23 = vld [vmem:[%s1 + $0x4] sm:$0xf]
    %v24 = vld [vmem:[%s1 + $0x8] sm:$0xf]
    %v25 = vld [vmem:[%s1 + $0xc] sm:$0xf]
    %v26 = vld [vmem:[%s1 + $0x10] sm:$0xf]
    %v27 = vld [vmem:[%s1 + $0x14] sm:$0xf]
    %v28 = vld [vmem:[%s1 + $0x18] sm:$0xf]
    %v29 = vld [vmem:[%s1 + $0x1c] sm:$0xf]
    %v30 = vld [vmem:[%s1 + $0x20] sm:$0xf]
    %v31 = vld [vmem:[%s1 + $0x24] sm:$0xf]
    %v32 = vld [vmem:[%s1 + $0x28] sm:$0xf]
    %v33 = vld [vmem:[%s1 + $0x2c] sm:$0xf]
    %v34 = vld [vmem:[%s1 + $0x30] sm:$0xf]
    %v35 = vld [vmem:[%s1 + $0x34] sm:$0xf]
    %v36 = vld [vmem:[%s1 + $0x38] sm:$0xf]
    %v37 = vld [vmem:[%s1 + $0x3c] sm:$0xf]
    %v38 = vld [vmem:[%s2] sm:$0xf]
    %v39 = vld [vmem:[%s2 + $0x4] sm:$0xf]
    %v40 = vld [vmem:[%s2 + $0x8] sm:$0xf]
    %v41 = vld [vmem:[%s2 + $0xc] sm:$0xf]
    %v42 = vld [vmem:[%s2 + $0x10] sm:$0xf]
    %v43 = vld [vmem:[%s2 + $0x14] sm:$0xf]
    %v44 = vld [vmem:[%s2 + $0x18] sm:$0xf]
    %v45 = vld [vmem:[%s2 + $0x1c] sm:$0xf]
    %v46 = vld [vmem:[%s3] sm:$0xff]
    %v47 = vld [vmem:[%s3 + $0x8] sm:$0xff]
    %v48 = vld [vmem:[%s3 + $0x10] sm:$0xff]
    %v49 = vld [vmem:[%s3 + $0x18] sm:$0xff]
    %v50 = vld [vmem:[%s3 + $0x20] sm:$0xff]
    %v51 = vld [vmem:[%s3 + $0x28] sm:$0xff]
    %v52 = vld [vmem:[%s3 + $0x30] sm:$0xff]
    %v53 = vld [vmem:[%s3 + $0x38] sm:$0xff]
    %v54 = vld [vmem:[%s3 + $0x40] sm:$0xff]
    %v55 = vld [vmem:[%s3 + $0x48] sm:$0xff]
    %v56 = vld [vmem:[%s3 + $0x50] sm:$0xff]
    %v57 = vld [vmem:[%s3 + $0x58] sm:$0xff]
    %v58 = vld [vmem:[%s3 + $0x60] sm:$0xff]
    %v59 = vld [vmem:[%s3 + $0x68] sm:$0xff]
    %v60 = vld [vmem:[%s3 + $0x70] sm:$0xff]
    %v61 = vld [vmem:[%s3 + $0x78] sm:$0xff]
    %v62 = vld [vmem:[%s4] sm:$0xff]
    %v63 = vld [vmem:[%s4 + $0x8] sm:$0xff]
    %v64 = vld [vmem:[%s4 + $0x10] sm:$0xff]
    %v65 = vld [vmem:[%s4 + $0x18] sm:$0xff]
    %v66 = vld [vmem:[%s4 + $0x20] sm:$0xff]
    %v67 = vld [vmem:[%s4 + $0x28] sm:$0xff]
    %v68 = vld [vmem:[%s4 + $0x30] sm:$0xff]
    %v69 = vld [vmem:[%s4 + $0x38] sm:$0xff]
    %v70 = vld [vmem:[%s4 + $0x40] sm:$0xff]
    %v71 = vld [vmem:[%s4 + $0x48] sm:$0xff]
    %v72 = vld [vmem:[%s4 + $0x50] sm:$0xff]
    %v73 = vld [vmem:[%s4 + $0x58] sm:$0xff]
    %v74 = vld [vmem:[%s4 + $0x60] sm:$0xff]
    %v75 = vld [vmem:[%s4 + $0x68] sm:$0xff]
    %v76 = vld [vmem:[%s4 + $0x70] sm:$0xff]
    %v77 = vld [vmem:[%s4 + $0x78] sm:$0xff]
    %v78 = vld [vmem:[%s0] sm:$0xf]
    %v79 = vld [vmem:[%s0 + $0x4] sm:$0xf]
    %v80 = vld [vmem:[%s0 + $0x8] sm:$0xf]
    %v81 = vld [vmem:[%s0 + $0xc] sm:$0xf]
    %v82 = vld [vmem:[%s0 + $0x10] sm:$0xf]
    %v83 = vld [vmem:[%s0 + $0x14] sm:$0xf]
    %v84 = vld [vmem:[%s0 + $0x18] sm:$0xf]
    %v85 = vld [vmem:[%s0 + $0x1c] sm:$0xf]
    %v102 = vunpack.c.l.b16 %v22
    %v103 = vunpack.c.l.b16 %v23
    %v104 = vunpack.c.l.b16 %v24
    %v105 = vunpack.c.l.b16 %v25
    %v106 = vunpack.c.l.b16 %v26
    %v107 = vunpack.c.l.b16 %v27
    %v108 = vunpack.c.l.b16 %v28
    %v109 = vunpack.c.l.b16 %v29
    %v110 = vunpack.c.l.b16 %v30
    %v111 = vunpack.c.l.b16 %v31
    %v112 = vunpack.c.l.b16 %v32
    %v113 = vunpack.c.l.b16 %v33
    %v114 = vunpack.c.l.b16 %v34
    %v115 = vunpack.c.l.b16 %v35
    %v116 = vunpack.c.l.b16 %v36
    %v117 = vunpack.c.l.b16 %v37
    %v118 = vpack.c.b16 %v103, %v102
    %v119 = vpack.c.b16 %v105, %v104
    %v120 = vpack.c.b16 %v107, %v106
    %v121 = vpack.c.b16 %v109, %v108
    %v122 = vpack.c.b16 %v111, %v110
    %v123 = vpack.c.b16 %v113, %v112
    %v124 = vpack.c.b16 %v115, %v114
    %v125 = vpack.c.b16 %v117, %v116
    %v134 = vunpack.c.l.b16 %v78
    %v135 = vunpack.c.l.b16 %v79
    %v136 = vunpack.c.l.b16 %v80
    %v137 = vunpack.c.l.b16 %v81
    %v138 = vunpack.c.l.b16 %v82
    %v139 = vunpack.c.l.b16 %v83
    %v140 = vunpack.c.l.b16 %v84
    %v141 = vunpack.c.l.b16 %v85
    %v142 = vpack.c.b16 %v135, %v134
    %v143 = vpack.c.b16 %v137, %v136
    %v144 = vpack.c.b16 %v139, %v138
    %v145 = vpack.c.b16 %v141, %v140
    %vm150 = vcmask 523264
    %v152 = vsel %vm150, %v118, 0
    %v155 = vsel %vm150, %v119, 0
    %v158 = vsel %vm150, %v120, 0
    %v161 = vsel %vm150, %v121, 0
    %v164 = vsel %vm150, %v122, 0
    %v167 = vsel %vm150, %v123, 0
    %v170 = vsel %vm150, %v124, 0
    %v173 = vsel %vm150, %v125, 0
    %175 = vmatprep.subr.bf16.mxu0 0
    %176 = vmatpush1.bf16.msra.mxu0 0
    %177 = vmatprep.subr.bf16.mxu0 0
    %178 = vmatpush1.bf16.msra.mxu0 0
    %179 = vmatprep.subr.bf16.mxu0 0
    %180 = vmatpush1.bf16.msra.mxu0 0
    %181 = vmatprep.subr.bf16.mxu0 0
    %182 = vmatpush1.bf16.msra.mxu0 0
    %183 = vmatprep.subr.bf16.mxu0 0
    %184 = vmatpush1.bf16.msra.mxu0 %v145
    %185 = vmatprep.subr.bf16.mxu0 0
    %186 = vmatpush1.bf16.msra.mxu0 %v144
    %187 = vmatprep.subr.bf16.mxu0 0
    %188 = vmatpush1.bf16.msra.mxu0 %v143
    %189 = vmatprep.subr.bf16.mxu0 0
    %190 = vmatpush1.bf16.msra.mxu0 %v142
    %191 = vmatprep.subr.bf16.mxu0 0
    %192 = vmatpush2.bf16.msra.mxu0 0
    %193 = vmatprep.subr.bf16.mxu0 0
    %194 = vmatpush2.bf16.msra.mxu0 0
    %195 = vmatprep.subr.bf16.mxu0 0
    %196 = vmatpush2.bf16.msra.mxu0 0
    %197 = vmatprep.subr.bf16.mxu0 0
    %198 = vmatpush2.bf16.msra.mxu0 0
    %199 = vmatprep.subr.bf16.mxu0 0
    %200 = vmatpush2.bf16.msra.mxu0 0
    %201 = vmatprep.subr.bf16.mxu0 0
    %202 = vmatpush2.bf16.msra.mxu0 0
    %203 = vmatprep.subr.bf16.mxu0 0
    %204 = vmatpush2.bf16.msra.mxu0 0
    %205 = vmatprep.subr.bf16.mxu0 0
    %206 = vmatpush2.bf16.msra.mxu0 0
    %207 = vmatprep.mubr.bf16.mxu0 0
    %208 = vmatmul.mubr.bf16.gmra.mxu0 %v152
    %v209 = vpop.f32.mrf.mxu0
    %v210 = vadd.f32 0.0, %v209
    %v211 = vpop.f32.mrf.mxu0
    %v212 = vpop.f32.mrf.mxu0
    %v213 = vadd.f32 0.0, %v212
    %v214 = vpop.f32.mrf.mxu0
    %215 = vmatprep.mubr.bf16.mxu0 0
    %216 = vmatmul.mubr.bf16.gmra.mxu0 %v155
    %v217 = vpop.f32.mrf.mxu0
    %v218 = vadd.f32 0.0, %v217
    %v219 = vpop.f32.mrf.mxu0
    %v220 = vpop.f32.mrf.mxu0
    %v221 = vadd.f32 0.0, %v220
    %v222 = vpop.f32.mrf.mxu0
    %223 = vmatprep.mubr.bf16.mxu0 0
    %224 = vmatmul.mubr.bf16.gmra.mxu0 %v158
    %v225 = vpop.f32.mrf.mxu0
    %v226 = vadd.f32 0.0, %v225
    %v227 = vpop.f32.mrf.mxu0
    %v228 = vpop.f32.mrf.mxu0
    %v229 = vadd.f32 0.0, %v228
    %v230 = vpop.f32.mrf.mxu0
    %231 = vmatprep.mubr.bf16.mxu0 0
    %232 = vmatmul.mubr.bf16.gmra.mxu0 %v161
    %v233 = vpop.f32.mrf.mxu0
    %v234 = vadd.f32 0.0, %v233
    %v235 = vpop.f32.mrf.mxu0
    %v236 = vpop.f32.mrf.mxu0
    %v237 = vadd.f32 0.0, %v236
    %v238 = vpop.f32.mrf.mxu0
    %239 = vmatprep.mubr.bf16.mxu0 0
    %240 = vmatmul.mubr.bf16.gmra.mxu0 %v164
    %v241 = vpop.f32.mrf.mxu0
    %v242 = vadd.f32 0.0, %v241
    %v243 = vpop.f32.mrf.mxu0
    %v244 = vpop.f32.mrf.mxu0
    %v245 = vadd.f32 0.0, %v244
    %v246 = vpop.f32.mrf.mxu0
    %247 = vmatprep.mubr.bf16.mxu0 0
    %248 = vmatmul.mubr.bf16.gmra.mxu0 %v167
    %v249 = vpop.f32.mrf.mxu0
    %v250 = vadd.f32 0.0, %v249
    %v251 = vpop.f32.mrf.mxu0
    %v252 = vpop.f32.mrf.mxu0
    %v253 = vadd.f32 0.0, %v252
    %v254 = vpop.f32.mrf.mxu0
    %255 = vmatprep.mubr.bf16.mxu0 0
    %256 = vmatmul.mubr.bf16.gmra.mxu0 %v170
    %v257 = vpop.f32.mrf.mxu0
    %v258 = vadd.f32 0.0, %v257
    %v259 = vpop.f32.mrf.mxu0
    %v260 = vpop.f32.mrf.mxu0
    %v261 = vadd.f32 0.0, %v260
    %v262 = vpop.f32.mrf.mxu0
    %263 = vmatprep.mubr.bf16.mxu0 0
    %264 = vmatmul.mubr.bf16.gmra.mxu0 %v173
    %v265 = vpop.f32.mrf.mxu0
    %v266 = vadd.f32 0.0, %v265
    %v267 = vpop.f32.mrf.mxu0
    %v268 = vpop.f32.mrf.mxu0
    %v269 = vadd.f32 0.0, %v268
    %v270 = vpop.f32.mrf.mxu0
    %271 = vdwg.mxu0
    %v272 = vmul.f32 %v210, %v46
    %v273 = vmul.f32 %v213, %v47
    %v274 = vmul.f32 %v218, %v48
    %v275 = vmul.f32 %v221, %v49
    %v276 = vmul.f32 %v226, %v50
    %v277 = vmul.f32 %v229, %v51
    %v278 = vmul.f32 %v234, %v52
    %v279 = vmul.f32 %v237, %v53
    %v280 = vmul.f32 %v242, %v54
    %v281 = vmul.f32 %v245, %v55
    %v282 = vmul.f32 %v250, %v56
    %v283 = vmul.f32 %v253, %v57
    %v284 = vmul.f32 %v258, %v58
    %v285 = vmul.f32 %v261, %v59
    %v286 = vmul.f32 %v266, %v60
    %v287 = vmul.f32 %v269, %v61
    %v288 = vmul.f32 %v242, %v62
    %v289 = vmul.f32 %v245, %v63
    %v290 = vmul.f32 %v250, %v64
    %v291 = vmul.f32 %v253, %v65
    %v292 = vmul.f32 %v258, %v66
    %v293 = vmul.f32 %v261, %v67
    %v294 = vmul.f32 %v266, %v68
    %v295 = vmul.f32 %v269, %v69
    %v296 = vmul.f32 %v210, %v70
    %v297 = vmul.f32 %v213, %v71
    %v298 = vmul.f32 %v218, %v72
    %v299 = vmul.f32 %v221, %v73
    %v300 = vmul.f32 %v226, %v74
    %v301 = vmul.f32 %v229, %v75
    %v302 = vmul.f32 %v234, %v76
    %v303 = vmul.f32 %v237, %v77
    %v304 = vadd.f32 %v272, %v288
    %v305 = vadd.f32 %v273, %v289
    %v306 = vadd.f32 %v274, %v290
    %v307 = vadd.f32 %v275, %v291
    %v308 = vadd.f32 %v276, %v292
    %v309 = vadd.f32 %v277, %v293
    %v310 = vadd.f32 %v278, %v294
    %v311 = vadd.f32 %v279, %v295
    %v312 = vadd.f32 %v280, %v296
    %v313 = vadd.f32 %v281, %v297
    %v314 = vadd.f32 %v282, %v298
    %v315 = vadd.f32 %v283, %v299
    %v316 = vadd.f32 %v284, %v300
    %v317 = vadd.f32 %v285, %v301
    %v318 = vadd.f32 %v286, %v302
    %v319 = vadd.f32 %v287, %v303
    %v320 = vpack.c.bf16 %v305, %v304
    %v321 = vpack.c.bf16 %v307, %v306
    %v322 = vpack.c.bf16 %v309, %v308
    %v323 = vpack.c.bf16 %v311, %v310
    %v324 = vpack.c.bf16 %v313, %v312
    %v325 = vpack.c.bf16 %v315, %v314
    %v326 = vpack.c.bf16 %v317, %v316
    %v327 = vpack.c.bf16 %v319, %v318
    %v336 = vunpack.c.l.b16 %v38
    %v337 = vunpack.c.l.b16 %v39
    %v338 = vunpack.c.l.b16 %v40
    %v339 = vunpack.c.l.b16 %v41
    %v340 = vunpack.c.l.b16 %v42
    %v341 = vunpack.c.l.b16 %v43
    %v342 = vunpack.c.l.b16 %v44
    %v343 = vunpack.c.l.b16 %v45
    %v344 = vpack.c.b16 %v337, %v336
    %v345 = vpack.c.b16 %v339, %v338
    %v346 = vpack.c.b16 %v341, %v340
    %v347 = vpack.c.b16 %v343, %v342
    %352 = vmatprep.subr.bf16.mxu0 0
    %353 = vmatpush1.bf16.msra.mxu0 %v327
    %354 = vmatprep.subr.bf16.mxu0 0
    %355 = vmatpush1.bf16.msra.mxu0 %v326
    %356 = vmatprep.subr.bf16.mxu0 0
    %357 = vmatpush1.bf16.msra.mxu0 %v325
    %358 = vmatprep.subr.bf16.mxu0 0
    %359 = vmatpush1.bf16.msra.mxu0 %v324
    %360 = vmatprep.subr.bf16.mxu0 0
    %361 = vmatpush1.bf16.msra.mxu0 %v323
    %362 = vmatprep.subr.bf16.mxu0 0
    %363 = vmatpush1.bf16.msra.mxu0 %v322
    %364 = vmatprep.subr.bf16.mxu0 0
    %365 = vmatpush1.bf16.msra.mxu0 %v321
    %366 = vmatprep.subr.bf16.mxu0 0
    %367 = vmatpush1.bf16.msra.mxu0 %v320
    %368 = vmatprep.subr.bf16.mxu0 0
    %369 = vmatpush2.bf16.msra.mxu0 0
    %370 = vmatprep.subr.bf16.mxu0 0
    %371 = vmatpush2.bf16.msra.mxu0 0
    %372 = vmatprep.subr.bf16.mxu0 0
    %373 = vmatpush2.bf16.msra.mxu0 0
    %374 = vmatprep.subr.bf16.mxu0 0
    %375 = vmatpush2.bf16.msra.mxu0 0
    %376 = vmatprep.subr.bf16.mxu0 0
    %377 = vmatpush2.bf16.msra.mxu0 0
    %378 = vmatprep.subr.bf16.mxu0 0
    %379 = vmatpush2.bf16.msra.mxu0 0
    %380 = vmatprep.subr.bf16.mxu0 0
    %381 = vmatpush2.bf16.msra.mxu0 0
    %382 = vmatprep.subr.bf16.mxu0 0
    %383 = vmatpush2.bf16.msra.mxu0 0
    %384 = vmatprep.mubr.bf16.mxu0 0
    %385 = vmatmul.mubr.bf16.gmra.mxu0 %v344
    %v386 = vpop.f32.mrf.mxu0
    %v387 = vadd.f32 0.0, %v386
    %v388 = vpop.f32.mrf.mxu0
    %v389 = vpop.f32.mrf.mxu0
    %v390 = vadd.f32 0.0, %v389
    %v391 = vpop.f32.mrf.mxu0
    %392 = vmatprep.mubr.bf16.mxu0 0
    %393 = vmatmul.mubr.bf16.gmra.mxu0 %v345
    %v394 = vpop.f32.mrf.mxu0
    %v395 = vadd.f32 0.0, %v394
    %v396 = vpop.f32.mrf.mxu0
    %v397 = vpop.f32.mrf.mxu0
    %v398 = vadd.f32 0.0, %v397
    %v399 = vpop.f32.mrf.mxu0
    %400 = vmatprep.mubr.bf16.mxu0 0
    %401 = vmatmul.mubr.bf16.gmra.mxu0 %v346
    %v402 = vpop.f32.mrf.mxu0
    %v403 = vadd.f32 0.0, %v402
    %v404 = vpop.f32.mrf.mxu0
    %v405 = vpop.f32.mrf.mxu0
    %v406 = vadd.f32 0.0, %v405
    %v407 = vpop.f32.mrf.mxu0
    %408 = vmatprep.mubr.bf16.mxu0 0
    %409 = vmatmul.mubr.bf16.gmra.mxu0 %v347
    %v410 = vpop.f32.mrf.mxu0
    %v411 = vadd.f32 0.0, %v410
    %v412 = vpop.f32.mrf.mxu0
    %v413 = vpop.f32.mrf.mxu0
    %v414 = vadd.f32 0.0, %v413
    %v415 = vpop.f32.mrf.mxu0
    %416 = vdwg.mxu0
    %417 = vst [vmem:[#allocation2] sm:$0xff] %v387
    %418 = vst [vmem:[#allocation2 + $0x8] sm:$0xff] %v390
    %419 = vst [vmem:[#allocation2 + $0x10] sm:$0xff] %v395
    %420 = vst [vmem:[#allocation2 + $0x18] sm:$0xff] %v398
    %421 = vst [vmem:[#allocation2 + $0x20] sm:$0xff] %v403
    %422 = vst [vmem:[#allocation2 + $0x28] sm:$0xff] %v406
    %423 = vst [vmem:[#allocation2 + $0x30] sm:$0xff] %v411
    %424 = vst [vmem:[#allocation2 + $0x38] sm:$0xff] %v414
    %s425 = scalar_lea.vmem %s0, 32
    %v426 = vld [vmem:[%s425] sm:$0xf]
    %v427 = vld [vmem:[%s425 + $0x4] sm:$0xf]
    %v428 = vld [vmem:[%s425 + $0x8] sm:$0xf]
    %v429 = vld [vmem:[%s425 + $0xc] sm:$0xf]
    %v430 = vld [vmem:[%s425 + $0x10] sm:$0xf]
    %v431 = vld [vmem:[%s425 + $0x14] sm:$0xf]
    %v432 = vld [vmem:[%s425 + $0x18] sm:$0xf]
    %v433 = vld [vmem:[%s425 + $0x1c] sm:$0xf]
    %v442 = vunpack.c.l.b16 %v426
    %v443 = vunpack.c.l.b16 %v427
    %v444 = vunpack.c.l.b16 %v428
    %v445 = vunpack.c.l.b16 %v429
    %v446 = vunpack.c.l.b16 %v430
    %v447 = vunpack.c.l.b16 %v431
    %v448 = vunpack.c.l.b16 %v432
    %v449 = vunpack.c.l.b16 %v433
    %v450 = vpack.c.b16 %v443, %v442
    %v451 = vpack.c.b16 %v445, %v444
    %v452 = vpack.c.b16 %v447, %v446
    %v453 = vpack.c.b16 %v449, %v448
    %458 = vmatprep.subr.bf16.mxu0 0
    %459 = vmatpush1.bf16.msra.mxu0 0
    %460 = vmatprep.subr.bf16.mxu0 0
    %461 = vmatpush1.bf16.msra.mxu0 0
    %462 = vmatprep.subr.bf16.mxu0 0
    %463 = vmatpush1.bf16.msra.mxu0 0
    %464 = vmatprep.subr.bf16.mxu0 0
    %465 = vmatpush1.bf16.msra.mxu0 0
    %466 = vmatprep.subr.bf16.mxu0 0
    %467 = vmatpush1.bf16.msra.mxu0 %v453
    %468 = vmatprep.subr.bf16.mxu0 0
    %469 = vmatpush1.bf16.msra.mxu0 %v452
    %470 = vmatprep.subr.bf16.mxu0 0
    %471 = vmatpush1.bf16.msra.mxu0 %v451
    %472 = vmatprep.subr.bf16.mxu0 0
    %473 = vmatpush1.bf16.msra.mxu0 %v450
    %474 = vmatprep.subr.bf16.mxu0 0
    %475 = vmatpush2.bf16.msra.mxu0 0
    %476 = vmatprep.subr.bf16.mxu0 0
    %477 = vmatpush2.bf16.msra.mxu0 0
    %478 = vmatprep.subr.bf16.mxu0 0
    %479 = vmatpush2.bf16.msra.mxu0 0
    %480 = vmatprep.subr.bf16.mxu0 0
    %481 = vmatpush2.bf16.msra.mxu0 0
    %482 = vmatprep.subr.bf16.mxu0 0
    %483 = vmatpush2.bf16.msra.mxu0 0
    %484 = vmatprep.subr.bf16.mxu0 0
    %485 = vmatpush2.bf16.msra.mxu0 0
    %486 = vmatprep.subr.bf16.mxu0 0
    %487 = vmatpush2.bf16.msra.mxu0 0
    %488 = vmatprep.subr.bf16.mxu0 0
    %489 = vmatpush2.bf16.msra.mxu0 0
    %490 = vmatprep.mubr.bf16.mxu0 0
    %491 = vmatmul.mubr.bf16.gmra.mxu0 %v152
    %v492 = vpop.f32.mrf.mxu0
    %v493 = vadd.f32 0.0, %v492
    %v494 = vpop.f32.mrf.mxu0
    %v495 = vpop.f32.mrf.mxu0
    %v496 = vadd.f32 0.0, %v495
    %v497 = vpop.f32.mrf.mxu0
    %498 = vmatprep.mubr.bf16.mxu0 0
    %499 = vmatmul.mubr.bf16.gmra.mxu0 %v155
    %v500 = vpop.f32.mrf.mxu0
    %v501 = vadd.f32 0.0, %v500
    %v502 = vpop.f32.mrf.mxu0
    %v503 = vpop.f32.mrf.mxu0
    %v504 = vadd.f32 0.0, %v503
    %v505 = vpop.f32.mrf.mxu0
    %506 = vmatprep.mubr.bf16.mxu0 0
    %507 = vmatmul.mubr.bf16.gmra.mxu0 %v158
    %v508 = vpop.f32.mrf.mxu0
    %v509 = vadd.f32 0.0, %v508
    %v510 = vpop.f32.mrf.mxu0
    %v511 = vpop.f32.mrf.mxu0
    %v512 = vadd.f32 0.0, %v511
    %v513 = vpop.f32.mrf.mxu0
    %514 = vmatprep.mubr.bf16.mxu0 0
    %515 = vmatmul.mubr.bf16.gmra.mxu0 %v161
    %v516 = vpop.f32.mrf.mxu0
    %v517 = vadd.f32 0.0, %v516
    %v518 = vpop.f32.mrf.mxu0
    %v519 = vpop.f32.mrf.mxu0
    %v520 = vadd.f32 0.0, %v519
    %v521 = vpop.f32.mrf.mxu0
    %522 = vmatprep.mubr.bf16.mxu0 0
    %523 = vmatmul.mubr.bf16.gmra.mxu0 %v164
    %v524 = vpop.f32.mrf.mxu0
    %v525 = vadd.f32 0.0, %v524
    %v526 = vpop.f32.mrf.mxu0
    %v527 = vpop.f32.mrf.mxu0
    %v528 = vadd.f32 0.0, %v527
    %v529 = vpop.f32.mrf.mxu0
    %530 = vmatprep.mubr.bf16.mxu0 0
    %531 = vmatmul.mubr.bf16.gmra.mxu0 %v167
    %v532 = vpop.f32.mrf.mxu0
    %v533 = vadd.f32 0.0, %v532
    %v534 = vpop.f32.mrf.mxu0
    %v535 = vpop.f32.mrf.mxu0
    %v536 = vadd.f32 0.0, %v535
    %v537 = vpop.f32.mrf.mxu0
    %538 = vmatprep.mubr.bf16.mxu0 0
    %539 = vmatmul.mubr.bf16.gmra.mxu0 %v170
    %v540 = vpop.f32.mrf.mxu0
    %v541 = vadd.f32 0.0, %v540
    %v542 = vpop.f32.mrf.mxu0
    %v543 = vpop.f32.mrf.mxu0
    %v544 = vadd.f32 0.0, %v543
    %v545 = vpop.f32.mrf.mxu0
    %546 = vmatprep.mubr.bf16.mxu0 0
    %547 = vmatmul.mubr.bf16.gmra.mxu0 %v173
    %v548 = vpop.f32.mrf.mxu0
    %v549 = vadd.f32 0.0, %v548
    %v550 = vpop.f32.mrf.mxu0
    %v551 = vpop.f32.mrf.mxu0
    %v552 = vadd.f32 0.0, %v551
    %v553 = vpop.f32.mrf.mxu0
    %554 = vdwg.mxu0
    %v555 = vmul.f32 %v493, %v46
    %v556 = vmul.f32 %v496, %v47
    %v557 = vmul.f32 %v501, %v48
    %v558 = vmul.f32 %v504, %v49
    %v559 = vmul.f32 %v509, %v50
    %v560 = vmul.f32 %v512, %v51
    %v561 = vmul.f32 %v517, %v52
    %v562 = vmul.f32 %v520, %v53
    %v563 = vmul.f32 %v525, %v54
    %v564 = vmul.f32 %v528, %v55
    %v565 = vmul.f32 %v533, %v56
    %v566 = vmul.f32 %v536, %v57
    %v567 = vmul.f32 %v541, %v58
    %v568 = vmul.f32 %v544, %v59
    %v569 = vmul.f32 %v549, %v60
    %v570 = vmul.f32 %v552, %v61
    %v571 = vmul.f32 %v525, %v62
    %v572 = vmul.f32 %v528, %v63
    %v573 = vmul.f32 %v533, %v64
    %v574 = vmul.f32 %v536, %v65
    %v575 = vmul.f32 %v541, %v66
    %v576 = vmul.f32 %v544, %v67
    %v577 = vmul.f32 %v549, %v68
    %v578 = vmul.f32 %v552, %v69
    %v579 = vmul.f32 %v493, %v70
    %v580 = vmul.f32 %v496, %v71
    %v581 = vmul.f32 %v501, %v72
    %v582 = vmul.f32 %v504, %v73
    %v583 = vmul.f32 %v509, %v74
    %v584 = vmul.f32 %v512, %v75
    %v585 = vmul.f32 %v517, %v76
    %v586 = vmul.f32 %v520, %v77
    %v587 = vadd.f32 %v555, %v571
    %v588 = vadd.f32 %v556, %v572
    %v589 = vadd.f32 %v557, %v573
    %v590 = vadd.f32 %v558, %v574
    %v591 = vadd.f32 %v559, %v575
    %v592 = vadd.f32 %v560, %v576
    %v593 = vadd.f32 %v561, %v577
    %v594 = vadd.f32 %v562, %v578
    %v595 = vadd.f32 %v563, %v579
    %v596 = vadd.f32 %v564, %v580
    %v597 = vadd.f32 %v565, %v581
    %v598 = vadd.f32 %v566, %v582
    %v599 = vadd.f32 %v567, %v583
    %v600 = vadd.f32 %v568, %v584
    %v601 = vadd.f32 %v569, %v585
    %v602 = vadd.f32 %v570, %v586
    %v603 = vpack.c.bf16 %v588, %v587
    %v604 = vpack.c.bf16 %v590, %v589
    %v605 = vpack.c.bf16 %v592, %v591
    %v606 = vpack.c.bf16 %v594, %v593
    %v607 = vpack.c.bf16 %v596, %v595
    %v608 = vpack.c.bf16 %v598, %v597
    %v609 = vpack.c.bf16 %v600, %v599
    %v610 = vpack.c.bf16 %v602, %v601
    %611 = vmatprep.subr.bf16.mxu0 0
    %612 = vmatpush1.bf16.msra.mxu0 %v610
    %613 = vmatprep.subr.bf16.mxu0 0
    %614 = vmatpush1.bf16.msra.mxu0 %v609
    %615 = vmatprep.subr.bf16.mxu0 0
    %616 = vmatpush1.bf16.msra.mxu0 %v608
    %617 = vmatprep.subr.bf16.mxu0 0
    %618 = vmatpush1.bf16.msra.mxu0 %v607
    %619 = vmatprep.subr.bf16.mxu0 0
    %620 = vmatpush1.bf16.msra.mxu0 %v606
    %621 = vmatprep.subr.bf16.mxu0 0
    %622 = vmatpush1.bf16.msra.mxu0 %v605
    %623 = vmatprep.subr.bf16.mxu0 0
    %624 = vmatpush1.bf16.msra.mxu0 %v604
    %625 = vmatprep.subr.bf16.mxu0 0
    %626 = vmatpush1.bf16.msra.mxu0 %v603
    %627 = vmatprep.subr.bf16.mxu0 0
    %628 = vmatpush2.bf16.msra.mxu0 0
    %629 = vmatprep.subr.bf16.mxu0 0
    %630 = vmatpush2.bf16.msra.mxu0 0
    %631 = vmatprep.subr.bf16.mxu0 0
    %632 = vmatpush2.bf16.msra.mxu0 0
    %633 = vmatprep.subr.bf16.mxu0 0
    %634 = vmatpush2.bf16.msra.mxu0 0
    %635 = vmatprep.subr.bf16.mxu0 0
    %636 = vmatpush2.bf16.msra.mxu0 0
    %637 = vmatprep.subr.bf16.mxu0 0
    %638 = vmatpush2.bf16.msra.mxu0 0
    %639 = vmatprep.subr.bf16.mxu0 0
    %640 = vmatpush2.bf16.msra.mxu0 0
    %641 = vmatprep.subr.bf16.mxu0 0
    %642 = vmatpush2.bf16.msra.mxu0 0
    %643 = vmatprep.mubr.bf16.mxu0 0
    %644 = vmatmul.mubr.bf16.gmra.mxu0 %v344
    %v645 = vpop.f32.mrf.mxu0
    %v646 = vadd.f32 0.0, %v645
    %v647 = vpop.f32.mrf.mxu0
    %v648 = vpop.f32.mrf.mxu0
    %v649 = vadd.f32 0.0, %v648
    %v650 = vpop.f32.mrf.mxu0
    %651 = vmatprep.mubr.bf16.mxu0 0
    %652 = vmatmul.mubr.bf16.gmra.mxu0 %v345
    %v653 = vpop.f32.mrf.mxu0
    %v654 = vadd.f32 0.0, %v653
    %v655 = vpop.f32.mrf.mxu0
    %v656 = vpop.f32.mrf.mxu0
    %v657 = vadd.f32 0.0, %v656
    %v658 = vpop.f32.mrf.mxu0
    %659 = vmatprep.mubr.bf16.mxu0 0
    %660 = vmatmul.mubr.bf16.gmra.mxu0 %v346
    %v661 = vpop.f32.mrf.mxu0
    %v662 = vadd.f32 0.0, %v661
    %v663 = vpop.f32.mrf.mxu0
    %v664 = vpop.f32.mrf.mxu0
    %v665 = vadd.f32 0.0, %v664
    %v666 = vpop.f32.mrf.mxu0
    %667 = vmatprep.mubr.bf16.mxu0 0
    %668 = vmatmul.mubr.bf16.gmra.mxu0 %v347
    %v669 = vpop.f32.mrf.mxu0
    %v670 = vadd.f32 0.0, %v669
    %v671 = vpop.f32.mrf.mxu0
    %v672 = vpop.f32.mrf.mxu0
    %v673 = vadd.f32 0.0, %v672
    %v674 = vpop.f32.mrf.mxu0
    %675 = vdwg.mxu0
    %s676 = scalar_lea.vmem [#allocation2], 64
    %677 = vst [vmem:[%s676] sm:$0xff] %v646
    %678 = vst [vmem:[%s676 + $0x8] sm:$0xff] %v649
    %679 = vst [vmem:[%s676 + $0x10] sm:$0xff] %v654
    %680 = vst [vmem:[%s676 + $0x18] sm:$0xff] %v657
    %681 = vst [vmem:[%s676 + $0x20] sm:$0xff] %v662
    %682 = vst [vmem:[%s676 + $0x28] sm:$0xff] %v665
    %683 = vst [vmem:[%s676 + $0x30] sm:$0xff] %v670
    %684 = vst [vmem:[%s676 + $0x38] sm:$0xff] %v673
    // Predicated region
    $region22: #{_global_filter_apply.1} parent=1 // pred_check
      _
    $region23: #{_global_filter_apply.1} parent=1 // pred_check_branch
      %686 = sbr.rel (0) target = $region25
    $region24: #{_global_filter_apply.1} parent=1 // pred_region
      %s688 = ssub.s32 2048, 2048
      %689 = vsyncadd [#allocation3], %s688
      %s690 = sshll.u32 [#allocation2], 4
      %s691 = int_to_ptr.vmem [resolvable:$true] %s690
      %696 = dma.vmem_to_hbm [thread:$0]  %s691, 2048, %s5, [#allocation3], 128, 128, 8
    $region25: #{_global_filter_apply.1} parent=1 // pred_fallthru
      _
    // Predicated region
    $region26: #{_global_filter_apply.1} parent=1 // pred_check
      _
    $region27: #{_global_filter_apply.1} parent=1 // pred_check_branch
      %698 = sbr.rel (0) target = $region29
    $region28: #{_global_filter_apply.1} parent=1 // pred_region
      %699 = dma.done [#allocation3], 2048
    $region29: #{_global_filter_apply.1} parent=1 // pred_fallthru
      _
    %700 = vsyncpa [#allocation3], 1

</llo_original>
